<compile_context>
chip_gen: v5e
topology: v5e:2x2
jax: 0.10.0
libtpu: 0.0.40
codegen_flags: <defaults>
</compile_context>

<pallas_src>
import jax
import jax.numpy as jnp
from jax.experimental import pallas as pl
from jax.experimental.pallas import tpu as pltpu


def _round_up(x, m):
    return ((x + m - 1) // m) * m


# ---------------------------------------------------------------------------
# Kernel 1: GPT2EmbdStage.forward — blocked embedding gather + add
# ---------------------------------------------------------------------------
def _make_embd_kernel(nsem, has_tt):
    """Build the gather kernel. nsem = number of in-flight row DMAs (static)."""

    def kernel(*refs):
        if has_tt:
            (ids_ref, pids_ref, tids_ref, wte_hbm, wpe_ref, o_ref,
             gat, pos_s, tt_gat, sems, tt_sems) = refs
        else:
            (ids_ref, pids_ref, wte_hbm, wpe_ref, o_ref,
             gat, pos_s, sems) = refs
            tids_ref = tt_gat = tt_sems = None

        i = pl.program_id(0)
        tm = o_ref.shape[0]
        base = i * tm

        def start_row(j):
            tok = ids_ref[base + j]
            pltpu.make_async_copy(
                wte_hbm.at[pl.ds(tok, 1), :],
                gat.at[pl.ds(j, 1), :],
                sems.at[j % nsem],
            ).start()
            if has_tt:
                tt = tids_ref[base + j]
                pltpu.make_async_copy(
                    wte_hbm.at[pl.ds(tt, 1), :],
                    tt_gat.at[pl.ds(j, 1), :],
                    tt_sems.at[j % nsem],
                ).start()

        def wait_row(j):
            pltpu.make_async_copy(
                wte_hbm.at[pl.ds(0, 1), :],
                gat.at[pl.ds(j, 1), :],
                sems.at[j % nsem],
            ).wait()
            if has_tt:
                pltpu.make_async_copy(
                    wte_hbm.at[pl.ds(0, 1), :],
                    tt_gat.at[pl.ds(j, 1), :],
                    tt_sems.at[j % nsem],
                ).wait()

        # Prime nsem row gathers (ids read from SMEM before any wait).
        @pl.loop(0, min(nsem, tm))
        def _(j):
            start_row(j)

        # Steady state: for each row, copy its position embedding row from the
        # VMEM-resident wpe table (independent of the DMA), wait for its wte
        # row DMA, then launch the gather nsem rows ahead.
        @pl.loop(0, tm)
        def _(j):
            pid = pids_ref[base + j]
            pos_s[pl.ds(j, 1), :] = wpe_ref[pl.ds(pid, 1), :]
            wait_row(j)

            @pl.when(j + nsem < tm)
            def _():
                start_row(j + nsem)

        # Single dense (TM, D) writeback.
        acc = gat[...].astype(jnp.float32) + pos_s[...].astype(jnp.float32)
        if has_tt:
            acc = acc + tt_gat[...].astype(jnp.float32)
        o_ref[...] = acc.astype(o_ref.dtype)

    return kernel


def gpt2_embd_stage(input_ids, wte, wpe, position_ids=None, token_type_ids=None,
                    past_length=0, *, tokens_per_block=256, n_dma_sems=8,
                    out_dtype=None):
    """hidden_states = wte[input_ids] + wpe[position_ids] (+ wte[token_type_ids])."""
    B, S = input_ids.shape
    V, D = wte.shape
    P, D2 = wpe.shape
    assert D == D2
    out_dtype = out_dtype or wte.dtype

    if position_ids is None:
        # TODO(synk): the `len_past` decode path (per-example position offsets)
        # is supported by passing explicit position_ids from the caller.
        pos = jnp.arange(past_length, past_length + S, dtype=jnp.int32)
        position_ids = jnp.broadcast_to(pos[None, :], (B, S))

    M = B * S
    TM = _round_up(min(tokens_per_block, _round_up(M, 8)), 8)
    M_pad = _round_up(M, TM)
    pad = M_pad - M
    NSEM = max(1, min(n_dma_sems, TM))

    def _flat(ids, hi):
        ids = jnp.clip(ids.reshape(M).astype(jnp.int32), 0, hi - 1)
        if pad:
            ids = jnp.concatenate([ids, jnp.zeros((pad,), jnp.int32)])
        return ids

    ids = _flat(input_ids, V)
    pids = _flat(position_ids, P)

    has_tt = token_type_ids is not None
    scalars = [ids, pids]
    num_prefetch = 2
    if has_tt:
        scalars.append(_flat(token_type_ids, V))
        num_prefetch = 3
        wpe_map = lambda i, ids_r, pids_r, tids_r: (0, 0)
        out_map = lambda i, ids_r, pids_r, tids_r: (i, 0)
    else:
        wpe_map = lambda i, ids_r, pids_r: (0, 0)
        out_map = lambda i, ids_r, pids_r: (i, 0)

    scratch = [pltpu.VMEM((TM, D), wte.dtype),   # gathered wte rows
               pltpu.VMEM((TM, D), wpe.dtype)]   # assembled position rows
    if has_tt:
        scratch.append(pltpu.VMEM((TM, D), wte.dtype))      # token-type rows
    scratch.append(pltpu.SemaphoreType.DMA((NSEM,)))
    if has_tt:
        scratch.append(pltpu.SemaphoreType.DMA((NSEM,)))

    out2d = pl.pallas_call(
        _make_embd_kernel(NSEM, has_tt),
        out_shape=jax.ShapeDtypeStruct((M_pad, D), out_dtype),
        grid_spec=pltpu.PrefetchScalarGridSpec(
            num_scalar_prefetch=num_prefetch,
            grid=(M_pad // TM,),
            in_specs=[
                pl.BlockSpec(memory_space=pl.ANY),       # wte stays in HBM
                pl.BlockSpec((P, D), wpe_map),           # wpe resident in VMEM
            ],
            out_specs=pl.BlockSpec((TM, D), out_map),
            scratch_shapes=scratch,
        ),
        compiler_params=pltpu.CompilerParams(
            dimension_semantics=("parallel",)),
    )(*scalars, wte, wpe)

    return out2d[:M].reshape(B, S, D)


# ---------------------------------------------------------------------------
# Kernel 2: tied LM head (wte is the weight this stage exports via
# send_wte_weight): lm_logits = hidden @ wte^T
# ---------------------------------------------------------------------------
def _lm_head_kernel(x_ref, w_ref, o_ref):
    # (tm, D) x (tn, D) -> (tm, tn); contract on D via trans_b dot_general so
    # the (V, D) weight layout feeds the MXU directly (bf16 in, f32 accumulate).
    o_ref[...] = jax.lax.dot_general(
        x_ref[...], w_ref[...],
        dimension_numbers=(((1,), (1,)), ((), ())),
        preferred_element_type=jnp.float32,
    ).astype(o_ref.dtype)


def prepare_tied_lm_head_weight(wte, *, tn=512, mxu_dtype=jnp.bfloat16):
    """One-time prep: cast the tied weight to the MXU dtype and pad the vocab
    to a multiple of the vocab tile so the per-call path does no HBM round-trip."""
    V, D = wte.shape
    tn = min(tn, _round_up(V, 128))
    V_pad = _round_up(V, tn)
    w = wte.astype(mxu_dtype)
    if V_pad != V:
        w = jnp.pad(w, ((0, V_pad - V), (0, 0)))
    return w


def tied_lm_head(hidden_states, w, *, vocab_size=None, tm=512, tn=512,
                 out_dtype=None, mxu_dtype=jnp.bfloat16):
    """lm_logits = hidden_states @ w^T (Linear, bias=False, tied embedding).

    `w` is ideally the output of prepare_tied_lm_head_weight (already bf16 and
    vocab-padded); a raw f32 (V, D) weight also works but pays a per-call
    cast/pad pass."""
    B, S, D = hidden_states.shape
    V_in, D2 = w.shape
    assert D == D2
    V = vocab_size if vocab_size is not None else V_in
    out_dtype = out_dtype or hidden_states.dtype

    M = B * S
    x2d = hidden_states.reshape(M, D).astype(mxu_dtype)
    w = w.astype(mxu_dtype)                      # no-op if already prepared

    tm = min(tm, _round_up(M, 8))                # sublane-aligned M tile
    tn = min(tn, _round_up(V_in, 128))           # lane-dense vocab tile
    M_pad = _round_up(M, tm)
    V_pad = _round_up(V_in, tn)
    if M_pad != M:
        x2d = jnp.pad(x2d, ((0, M_pad - M), (0, 0)))
    if V_pad != V_in:
        # TODO(synk): hoisted by prepare_tied_lm_head_weight; kept as fallback.
        w = jnp.pad(w, ((0, V_pad - V_in), (0, 0)))

    isz = lambda dt: jnp.dtype(dt).itemsize
    # double-buffered inputs + output; cap at 32 MiB so v7x (64 MiB VMEM) keeps headroom.
    vmem_need = 2 * (tm * D * isz(mxu_dtype)
                     + tn * D * isz(mxu_dtype)
                     + tm * tn * isz(out_dtype))
    vmem_limit = int(min(max(2 * vmem_need, 16 * 1024 * 1024), 32 * 1024 * 1024))

    out2d = pl.pallas_call(
        _lm_head_kernel,
        out_shape=jax.ShapeDtypeStruct((M_pad, V_pad), out_dtype),
        grid_spec=pltpu.PrefetchScalarGridSpec(
            num_scalar_prefetch=0,
            grid=(M_pad // tm, V_pad // tn),
            in_specs=[pl.BlockSpec((tm, D), lambda i, j: (i, 0)),
                      pl.BlockSpec((tn, D), lambda i, j: (j, 0))],
            out_specs=pl.BlockSpec((tm, tn), lambda i, j: (i, j)),
        ),
        compiler_params=pltpu.CompilerParams(
            dimension_semantics=("parallel", "parallel"),
            vmem_limit_bytes=vmem_limit,
        ),
        cost_estimate=pl.CostEstimate(
            flops=2 * M_pad * V_pad * D,
            transcendentals=0,
            bytes_accessed=(M_pad * D * isz(mxu_dtype)
                            + (M_pad // tm) * V_pad * D * isz(mxu_dtype)
                            + M_pad * V_pad * isz(out_dtype)),
        ),
    )(x2d, w)

    return out2d[:M, :V].reshape(B, S, V)


if __name__ == "__main__":
    # Small shapes consistent with the module: batch=2, seq=8, n_embd=32,
    # vocab=250 (deliberately NOT a multiple of 128), n_positions=64.
    batch, seq, n_embd, vocab, n_positions = 2, 8, 32, 250, 64

    key = jax.random.PRNGKey(0)
    k_ids, k_tt, k_wte, k_wpe = jax.random.split(key, 4)

    input_ids = jax.random.randint(k_ids, (batch, seq), 0, vocab, dtype=jnp.int32)
    token_type_ids = jax.random.randint(k_tt, (batch, seq), 0, vocab, dtype=jnp.int32)
    # GPT-2 init: normal(mean=0, std=0.02)
    wte = 0.02 * jax.random.normal(k_wte, (vocab, n_embd), dtype=jnp.float32)
    wpe = 0.02 * jax.random.normal(k_wpe, (n_positions, n_embd), dtype=jnp.float32)

    # --- GPT2EmbdStage.forward, default path (token_type_ids=None) ---
    hidden = gpt2_embd_stage(input_ids, wte, wpe)
    jax.block_until_ready(hidden)
    pos = jnp.arange(seq, dtype=jnp.int32)
    ref_hidden = wte[input_ids] + wpe[pos][None, :, :]
    assert hidden.shape == (batch, seq, n_embd)
    assert jnp.allclose(hidden, ref_hidden, atol=1e-6, rtol=1e-6)

    # --- token_type_ids path ---
    hidden_tt = gpt2_embd_stage(input_ids, wte, wpe, token_type_ids=token_type_ids)
    jax.block_until_ready(hidden_tt)
    ref_tt = ref_hidden + wte[token_type_ids]
    assert jnp.allclose(hidden_tt, ref_tt, atol=1e-6, rtol=1e-6)

    # --- tied LM head using the wte weight this stage exports (send_wte_weight) ---
    w_head = prepare_tied_lm_head_weight(wte)            # hoisted pad + bf16 cast
    logits = tied_lm_head(hidden, w_head, vocab_size=vocab)
    jax.block_until_ready(logits)
    ref_logits = jnp.einsum(
        "bsd,vd->bsv",
        hidden.astype(jnp.bfloat16).astype(jnp.float32),
        wte.astype(jnp.bfloat16).astype(jnp.float32))
    assert logits.shape == (batch, seq, vocab)
    assert jnp.allclose(logits, ref_logits, atol=1e-4, rtol=1e-3)

    print("KERNEL_OK")
</pallas_src>

<mosaic_0001>
module attributes {stable_mosaic.version = 11 : i64} {
  func.func @kernel(%arg0: i32, %arg1: memref<16xi32, #tpu.memory_space<smem>>, %arg2: memref<16xi32, #tpu.memory_space<smem>>, %arg3: memref<250x32xf32, #tpu.memory_space<any>>, %arg4: memref<64x32xf32, #tpu.memory_space<vmem>>, %arg5: memref<16x32xf32, #tpu.memory_space<vmem>>, %arg6: memref<16x32xf32, #tpu.memory_space<vmem>>, %arg7: memref<16x32xf32, #tpu.memory_space<vmem>>, %arg8: memref<8x!tpu.dma_semaphore, #tpu.memory_space<semaphore_mem>>) attributes {dimension_semantics = [#tpu.dimension_semantics<parallel>], iteration_bounds = array<i64: 1>, scalar_prefetch = 2 : i64, scratch_operands = 3 : i64, tpu.core_type = #tpu.core_type<tc>, window_params = [{}, {pipeline_mode = #tpu.pipeline_mode<synchronous>, transform_indices = @transform_1, window_bounds = array<i64: 64, 32>}, {transform_indices = @transform_2, window_bounds = array<i64: 16, 32>}]} {
    %c16_i32 = arith.constant 16 : i32
    %0 = arith.muli %arg0, %c16_i32 : i32
    %c0_i32 = arith.constant 0 : i32
    %c8_i32 = arith.constant 8 : i32
    %1 = arith.addi %c0_i32, %c8_i32 : i32
    %c1_i32 = arith.constant 1 : i32
    scf.for %arg9 = %c0_i32 to %1 step %c1_i32  : i32 {
      %c1_i32_10 = arith.constant 1 : i32
      %7 = arith.muli %arg9, %c1_i32_10 : i32
      %c0_i32_11 = arith.constant 0 : i32
      %8 = arith.addi %c0_i32_11, %7 : i32
      %9 = arith.addi %0, %8 : i32
      %10 = arith.index_cast %9 : i32 to index
      %11 = memref.load %arg1[%10] : memref<16xi32, #tpu.memory_space<smem>>
      %c8_i32_12 = arith.constant 8 : i32
      %c0_i32_13 = arith.constant 0 : i32
      %12 = arith.cmpi eq, %c8_i32_12, %c0_i32_13 : i32
      %c1_i32_14 = arith.constant 1 : i32
      %13 = arith.select %12, %c1_i32_14, %c8_i32_12 : i32
      %14 = arith.remsi %8, %13 : i32
      %c0_i32_15 = arith.constant 0 : i32
      %15 = arith.cmpi ne, %14, %c0_i32_15 : i32
      %c0_i32_16 = arith.constant 0 : i32
      %16 = arith.cmpi slt, %14, %c0_i32_16 : i32
      %c0_i32_17 = arith.constant 0 : i32
      %17 = arith.cmpi slt, %13, %c0_i32_17 : i32
      %18 = arith.xori %16, %17 : i1
      %19 = arith.andi %18, %15 : i1
      %20 = arith.addi %14, %13 : i32
      %21 = arith.select %19, %20, %14 : i32
      %c0_i32_18 = arith.constant 0 : i32
      %22 = tpu.memref_slice %arg3[%11, %c0_i32_18] : memref<250x32xf32, #tpu.memory_space<any>> -> memref<1x32xf32, #tpu.memory_space<any>>
      %c0_i32_19 = arith.constant 0 : i32
      %23 = tpu.memref_slice %arg6[%8, %c0_i32_19] : memref<16x32xf32, #tpu.memory_space<vmem>> -> memref<1x32xf32, #tpu.memory_space<vmem>>
      %24 = tpu.memref_slice %arg8[%21] : memref<8x!tpu.dma_semaphore, #tpu.memory_space<semaphore_mem>> -> memref<1x!tpu.dma_semaphore, #tpu.memory_space<semaphore_mem>>
      %25 = tpu.memref_squeeze %24 : memref<1x!tpu.dma_semaphore, #tpu.memory_space<semaphore_mem>> -> memref<!tpu.dma_semaphore, #tpu.memory_space<semaphore_mem>>
      tpu.enqueue_dma source(%22 : memref<1x32xf32, #tpu.memory_space<any>>) target(%23 : memref<1x32xf32, #tpu.memory_space<vmem>>) target_semaphore(%25 : memref<!tpu.dma_semaphore, #tpu.memory_space<semaphore_mem>>)
    }
    %c8_i32_0 = arith.constant 8 : i32
    %c0_i32_1 = arith.constant 0 : i32
    %c16_i32_2 = arith.constant 16 : i32
    %2 = arith.addi %c0_i32_1, %c16_i32_2 : i32
    %c1_i32_3 = arith.constant 1 : i32
    scf.for %arg9 = %c0_i32_1 to %2 step %c1_i32_3  : i32 {
      %c1_i32_10 = arith.constant 1 : i32
      %7 = arith.muli %arg9, %c1_i32_10 : i32
      %c0_i32_11 = arith.constant 0 : i32
      %8 = arith.addi %c0_i32_11, %7 : i32
      %9 = arith.addi %0, %8 : i32
      %10 = arith.index_cast %9 : i32 to index
      %11 = memref.load %arg2[%10] : memref<16xi32, #tpu.memory_space<smem>>
      %12 = arith.index_cast %11 : i32 to index
      %c0_12 = arith.constant 0 : index
      %13 = vector.load %arg4[%12, %c0_12] : memref<64x32xf32, #tpu.memory_space<vmem>>, vector<1x32xf32>
      %14 = arith.index_cast %8 : i32 to index
      %c0_13 = arith.constant 0 : index
      %15 = vector.load %arg7[%14, %c0_13] : memref<16x32xf32, #tpu.memory_space<vmem>>, vector<1x32xf32>
      tpu.vector_store %arg7[%14, %c0_13], %13 {strides = array<i32>} : memref<16x32xf32, #tpu.memory_space<vmem>>, vector<1x32xf32>,
      %c8_i32_14 = arith.constant 8 : i32
      %c0_i32_15 = arith.constant 0 : i32
      %16 = arith.cmpi eq, %c8_i32_14, %c0_i32_15 : i32
      %c1_i32_16 = arith.constant 1 : i32
      %17 = arith.select %16, %c1_i32_16, %c8_i32_14 : i32
      %18 = arith.remsi %8, %17 : i32
      %c0_i32_17 = arith.constant 0 : i32
      %19 = arith.cmpi ne, %18, %c0_i32_17 : i32
      %c0_i32_18 = arith.constant 0 : i32
      %20 = arith.cmpi slt, %18, %c0_i32_18 : i32
      %c0_i32_19 = arith.constant 0 : i32
      %21 = arith.cmpi slt, %17, %c0_i32_19 : i32
      %22 = arith.xori %20, %21 : i1
      %23 = arith.andi %22, %19 : i1
      %24 = arith.addi %18, %17 : i32
      %25 = arith.select %23, %24, %18 : i32
      %c0_i32_20 = arith.constant 0 : i32
      %c0_i32_21 = arith.constant 0 : i32
      %26 = tpu.memref_slice %arg3[%c0_i32_20, %c0_i32_21] : memref<250x32xf32, #tpu.memory_space<any>> -> memref<1x32xf32, #tpu.memory_space<any>>
      %c0_i32_22 = arith.constant 0 : i32
      %27 = tpu.memref_slice %arg6[%8, %c0_i32_22] : memref<16x32xf32, #tpu.memory_space<vmem>> -> memref<1x32xf32, #tpu.memory_space<vmem>>
      %28 = tpu.memref_slice %arg8[%25] : memref<8x!tpu.dma_semaphore, #tpu.memory_space<semaphore_mem>> -> memref<1x!tpu.dma_semaphore, #tpu.memory_space<semaphore_mem>>
      %29 = tpu.memref_squeeze %28 : memref<1x!tpu.dma_semaphore, #tpu.memory_space<semaphore_mem>> -> memref<!tpu.dma_semaphore, #tpu.memory_space<semaphore_mem>>
      tpu.wait_dma2 semaphore(%29 : memref<!tpu.dma_semaphore, #tpu.memory_space<semaphore_mem>>) src(%26 : memref<1x32xf32, #tpu.memory_space<any>>) dst(%27 : memref<1x32xf32, #tpu.memory_space<vmem>>)
      %c8_i32_23 = arith.constant 8 : i32
      %30 = arith.addi %8, %c8_i32_23 : i32
      %c16_i32_24 = arith.constant 16 : i32
      %31 = arith.cmpi slt, %30, %c16_i32_24 : i32
      %32 = arith.extui %31 : i1 to i32
      %c0_i32_25 = arith.constant 0 : i32
      %33 = arith.cmpi ne, %32, %c0_i32_25 : i32
      scf.if %33 {
        %c8_i32_26 = arith.constant 8 : i32
        %34 = arith.addi %8, %c8_i32_26 : i32
        %35 = arith.addi %0, %34 : i32
        %36 = arith.index_cast %35 : i32 to index
        %37 = memref.load %arg1[%36] : memref<16xi32, #tpu.memory_space<smem>>
        %c8_i32_27 = arith.constant 8 : i32
        %c0_i32_28 = arith.constant 0 : i32
        %38 = arith.cmpi eq, %c8_i32_27, %c0_i32_28 : i32
        %c1_i32_29 = arith.constant 1 : i32
        %39 = arith.select %38, %c1_i32_29, %c8_i32_27 : i32
        %40 = arith.remsi %34, %39 : i32
        %c0_i32_30 = arith.constant 0 : i32
        %41 = arith.cmpi ne, %40, %c0_i32_30 : i32
        %c0_i32_31 = arith.constant 0 : i32
        %42 = arith.cmpi slt, %40, %c0_i32_31 : i32
        %c0_i32_32 = arith.constant 0 : i32
        %43 = arith.cmpi slt, %39, %c0_i32_32 : i32
        %44 = arith.xori %42, %43 : i1
        %45 = arith.andi %44, %41 : i1
        %46 = arith.addi %40, %39 : i32
        %47 = arith.select %45, %46, %40 : i32
        %c0_i32_33 = arith.constant 0 : i32
        %48 = tpu.memref_slice %arg3[%37, %c0_i32_33] : memref<250x32xf32, #tpu.memory_space<any>> -> memref<1x32xf32, #tpu.memory_space<any>>
        %c0_i32_34 = arith.constant 0 : i32
        %49 = tpu.memref_slice %arg6[%34, %c0_i32_34] : memref<16x32xf32, #tpu.memory_space<vmem>> -> memref<1x32xf32, #tpu.memory_space<vmem>>
        %50 = tpu.memref_slice %arg8[%47] : memref<8x!tpu.dma_semaphore, #tpu.memory_space<semaphore_mem>> -> memref<1x!tpu.dma_semaphore, #tpu.memory_space<semaphore_mem>>
        %51 = tpu.memref_squeeze %50 : memref<1x!tpu.dma_semaphore, #tpu.memory_space<semaphore_mem>> -> memref<!tpu.dma_semaphore, #tpu.memory_space<semaphore_mem>>
        tpu.enqueue_dma source(%48 : memref<1x32xf32, #tpu.memory_space<any>>) target(%49 : memref<1x32xf32, #tpu.memory_space<vmem>>) target_semaphore(%51 : memref<!tpu.dma_semaphore, #tpu.memory_space<semaphore_mem>>)
      } else {
      }
    }
    %c16_i32_4 = arith.constant 16 : i32
    %c0 = arith.constant 0 : index
    %c0_5 = arith.constant 0 : index
    %3 = vector.load %arg6[%c0, %c0_5] : memref<16x32xf32, #tpu.memory_space<vmem>>, vector<16x32xf32>
    %c0_6 = arith.constant 0 : index
    %c0_7 = arith.constant 0 : index
    %4 = vector.load %arg7[%c0_6, %c0_7] : memref<16x32xf32, #tpu.memory_space<vmem>>, vector<16x32xf32>
    %5 = arith.addf %3, %4 : vector<16x32xf32>
    %c0_8 = arith.constant 0 : index
    %c0_9 = arith.constant 0 : index
    %6 = vector.load %arg5[%c0_8, %c0_9] : memref<16x32xf32, #tpu.memory_space<vmem>>, vector<16x32xf32>
    tpu.vector_store %arg5[%c0_8, %c0_9], %5 {strides = array<i32>} : memref<16x32xf32, #tpu.memory_space<vmem>>, vector<16x32xf32>,
    return
  }
  func.func @transform_1(%arg0: i32, %arg1: memref<16xi32, #tpu.memory_space<smem>>, %arg2: memref<16xi32, #tpu.memory_space<smem>>) -> (i32, i32) {
    %c0_i32 = arith.constant 0 : i32
    %c0_i32_0 = arith.constant 0 : i32
    %c0_i32_1 = arith.constant 0 : i32
    return %c0_i32, %c0_i32_0 : i32, i32
  }
  func.func @transform_2(%arg0: i32, %arg1: memref<16xi32, #tpu.memory_space<smem>>, %arg2: memref<16xi32, #tpu.memory_space<smem>>) -> (i32, i32) {
    %c0_i32 = arith.constant 0 : i32
    %c0_i32_0 = arith.constant 0 : i32
    return %arg0, %c0_i32 : i32, i32
  }
}

</mosaic_0001>

<llo_original>
// kernel: tpu_custom_call.1
$region0: #{tpu_custom_call.1}
  #allocation0 [shape = 'u32[]', space=smem, size = 0x4, offset = 0x4, fixed_abs, tag = 'smem constant byte address 0x4 - core index']
  #allocation1 [shape = 'u32[72,128]{1,0:T(1,128)}', space=vmem, size = 0x9000, scoped, tag = 'internal scratch']
  #allocation2 [shape = 'f32[16,32]{1,0:T(8,128)}', space=vmem, size = 0x2000, scoped, tag = 'scratch operand']
  #allocation3 [shape = 'f32[16,32]{1,0:T(8,128)}', space=vmem, size = 0x2000, scoped, tag = 'scratch operand']
  #allocation4 [shape = 's32[8]{0}', space=sflag, size = 0x20, scoped, tag = 'scratch operand']
  #allocation5 [shape = 's32[1]{0}', space=sflag, size = 0x4, scoped, tag = 'scoped memory for tpu_custom_call.1']
  #allocation6 [shape = 'u8[512]{0}', space=smem, size = 0x200, scoped, tag = 'prefetched SMEM operand 0']
  #allocation7 [shape = 'u8[512]{0}', space=smem, size = 0x200, scoped, tag = 'prefetched SMEM operand 1']
  #allocation10 [shape = 's32[]', space=sflag, size = 0x4, offset = 0, fixed_abs, tag = 'sflag constant byte address 0x0 - dummy sync flag']
  #allocation11 [shape = 's32[]', space=sflag, size = 0x4, offset = 0, fixed_abs, tag = 'sflag constant byte address 0x0 - dummy sync flag']
  %s0 = inlined_call_operand.vmem [shape: s32[16], index: 0, kind: input, shape index: {}]
  %s1 = inlined_call_operand.vmem [shape: s32[16], index: 1, kind: input, shape index: {}]
  %s2 = inlined_call_operand.vmem [shape: f32[250,32], index: 2, kind: input, shape index: {}]
  %s3 = inlined_call_operand.vmem [shape: f32[64,32], index: 3, kind: input, shape index: {}]
  %s4 = inlined_call_operand.hbm [shape: f32[16,32], index: 4, kind: output, shape index: {}]
  %s5 = sld [smem:[#allocation0]]
  $region92: #{tpu_custom_call.1} parent=0
    _
  %s7 = ssub.s32 1, %s5
  %s8 = scalar_select 0, %s7, %s5
  %s10 = sshll.u32 %s0, 4
  %s11 = int_to_ptr.vmem [resolvable:$true] %s10
  %13 = dma.vmem_to_smem %s11, 16, [#allocation6], [#allocation5]
  %s15 = sshll.u32 %s1, 4
  %s16 = int_to_ptr.vmem [resolvable:$true] %s15
  %18 = dma.vmem_to_smem %s16, 16, [#allocation7], [#allocation5]
  %20 = dma.done [#allocation5], 32
  %21 = sfence
  $region1: #{tpu_custom_call.1} parent=0
    #allocation8 [shape = 'u8[8192]{0}', space=vmem, size = 0x2000, scoped, tag = 'output window, operand 0, single buffered']
    #allocation9 [shape = 's32[1]{0}', space=sflag, size = 0x4, scoped, tag = 'scoped memory for tpu_custom_call.1']
    %22 = vsyncpa [#allocation9], 0
    // Predicated region
    $region2: #{tpu_custom_call.1} parent=1 // pred_check
      _
    $region3: #{tpu_custom_call.1} parent=1 // pred_check_branch
      %24 = sbr.rel (0) target = $region5
    $region4: #{tpu_custom_call.1} parent=1 // pred_region
      _
    $region5: #{tpu_custom_call.1} parent=1 // pred_fallthru
      _
    %s25 = smul.u32 0, 16
    loop: start=0, step=1, limit=8
    $region6: #{tpu_custom_call.1} parent=1 // loop_pre_header
      _
    $region7: #{tpu_custom_call.1} parent=1 // loop_header
      %s27 = sphi 0, %s31
      %p28 = scmp.ge.s32.totalorder %s27, 8
    $region8: #{tpu_custom_call.1} parent=1 // loop_header_branch
      %30 = sbr.rel (%p28) target = $region12
    $region9: #{tpu_custom_call.1} parent=1 // loop_body
      %s32 = sadd.s32 %s25, %s27
      %s33 = sld [smem:[#allocation6 + %s32]]
      %p34 = scmp.lt.s32.totalorder %s27, 0
      %s35 = ssub.s32 0, %s27
      %s36 = scalar_select %p34, %s35, %s27
      %s37 = sand.u32 %s36, 7
      %s38 = ssub.s32 0, %s37
      %s39 = scalar_select %p34, %s38, %s37
      %p40 = scmp.ne.s32.totalorder %s39, 0
      %p41 = scmp.lt.s32.totalorder %s39, 0
      %p42 = pnand %p41, %p40
      %p43 = pneg %p42
      %s44 = sadd.s32 %s39, 8
      %s45 = scalar_select %p43, %s44, %s39
      %s46 = scalar_lea.vmem %s2, %s33
      %s47 = scalar_lea.vmem [#allocation2], %s27
      %s48 = scalar_lea.sflag [#allocation4], %s45
      // Predicated region
      $region13: #{tpu_custom_call.1} parent=9 // pred_check
        _
      $region14: #{tpu_custom_call.1} parent=9 // pred_check_branch
        %50 = sbr.rel target = $region16
      $region15: #{tpu_custom_call.1} parent=9 // pred_region
        // Predicated region
        $region28: #{tpu_custom_call.1} parent=15 // pred_check
          _
        $region29: #{tpu_custom_call.1} parent=15 // pred_check_branch
          %66 = sbr.rel (0) target = $region31
        $region30: #{tpu_custom_call.1} parent=15 // pred_region
          %s68 = ssub.s32 2, 1
          loop: start=0, step=1, limit=1
          $region32: #{tpu_custom_call.1} parent=30 // loop_pre_header
            _
          $region33: #{tpu_custom_call.1} parent=30 // loop_header
            %s70 = sphi 0, %s74
            %p71 = scmp.ge.s32.totalorder %s70, 1
            %s75 = sphi %s46, %s46
            %s76 = sphi %s47, %s47
          $region34: #{tpu_custom_call.1} parent=30 // loop_header_branch
            %73 = sbr.rel (%p71) target = $region38
          $region35: #{tpu_custom_call.1} parent=30 // loop_body
            %v77 = vld [vmem:[%s75] sm:%s68]
            %78 = vst [vmem:[%s76] sm:%s68] %v77
          $region36: #{tpu_custom_call.1} parent=30 // loop_footer
            %s74 = sadd.s32 1, %s70
          $region37: #{tpu_custom_call.1} parent=30 // loop_footer_branch
            %69 = sbr.rel target = $region33
          $region38: #{tpu_custom_call.1} parent=30 // loop_exit
            _
        $region31: #{tpu_custom_call.1} parent=15 // pred_fallthru
          _
      $region16: #{tpu_custom_call.1} parent=9 // pred_fallthru
        _
      // Predicated region
      $region17: #{tpu_custom_call.1} parent=9 // pred_check
        _
      $region18: #{tpu_custom_call.1} parent=9 // pred_check_branch
        %52 = sbr.rel (0) target = $region20
      $region19: #{tpu_custom_call.1} parent=9 // pred_region
        %s54 = ssub.s32 2, 1
        loop: start=0, step=1, limit=1
        $region21: #{tpu_custom_call.1} parent=19 // loop_pre_header
          _
        $region22: #{tpu_custom_call.1} parent=19 // loop_header
          %s56 = sphi 0, %s60
          %p57 = scmp.ge.s32.totalorder %s56, 1
          %s61 = sphi %s46, %s46
          %s62 = sphi %s47, %s47
        $region23: #{tpu_custom_call.1} parent=19 // loop_header_branch
          %59 = sbr.rel (%p57) target = $region27
        $region24: #{tpu_custom_call.1} parent=19 // loop_body
          %v63 = vld [vmem:[%s61] sm:%s54]
          %64 = vst [vmem:[%s62] sm:%s54] %v63
        $region25: #{tpu_custom_call.1} parent=19 // loop_footer
          %s60 = sadd.s32 1, %s56
        $region26: #{tpu_custom_call.1} parent=19 // loop_footer_branch
          %55 = sbr.rel target = $region22
        $region27: #{tpu_custom_call.1} parent=19 // loop_exit
          _
      $region20: #{tpu_custom_call.1} parent=9 // pred_fallthru
        _
      // Predicated region
      $region39: #{tpu_custom_call.1} parent=9 // pred_check
        _
      $region40: #{tpu_custom_call.1} parent=9 // pred_check_branch
        %81 = sbr.rel (0) target = $region42
      $region41: #{tpu_custom_call.1} parent=9 // pred_region
        %82 = vsyncadd %s48, 16
      $region42: #{tpu_custom_call.1} parent=9 // pred_fallthru
        _
    $region10: #{tpu_custom_call.1} parent=1 // loop_footer
      %s31 = sadd.s32 1, %s27
    $region11: #{tpu_custom_call.1} parent=1 // loop_footer_branch
      %26 = sbr.rel target = $region7
    $region12: #{tpu_custom_call.1} parent=1 // loop_exit
      _
    loop: start=0, step=1, limit=16
    $region43: #{tpu_custom_call.1} parent=1 // loop_pre_header
      _
    $region44: #{tpu_custom_call.1} parent=1 // loop_header
      %s84 = sphi 0, %s88
      %p85 = scmp.ge.s32.totalorder %s84, 16
    $region45: #{tpu_custom_call.1} parent=1 // loop_header_branch
      %87 = sbr.rel (%p85) target = $region49
    $region46: #{tpu_custom_call.1} parent=1 // loop_body
      %s89 = sadd.s32 %s25, %s84
      %s90 = sld [smem:[#allocation7 + %s89]]
      %s91 = scalar_lea.vmem %s3, %s90
      %v92 = vld [vmem:[%s91] sm:$0x1]
      %s93 = scalar_lea.vmem [#allocation3], %s84
      %vm94 = vcmask 253952
      %95 = vst.msk [vmem:[%s93] sm:$0x1] %vm94, %v92
      %p96 = scmp.lt.s32.totalorder %s84, 0
      %s97 = ssub.s32 0, %s84
      %s98 = scalar_select %p96, %s97, %s84
      %s99 = sand.u32 %s98, 7
      %s100 = ssub.s32 0, %s99
      %s101 = scalar_select %p96, %s100, %s99
      %p102 = scmp.ne.s32.totalorder %s101, 0
      %p103 = scmp.lt.s32.totalorder %s101, 0
      %p104 = pnand %p103, %p102
      %p105 = pneg %p104
      %s106 = sadd.s32 %s101, 8
      %s107 = scalar_select %p105, %s106, %s101
      %s108 = scalar_lea.sflag [#allocation4], %s107
      %s109 = smul.u32 1, 1
      %s110 = sshll.u32 %s109, 4
      %111 = dma.done %s108, %s110
      %s112 = sadd.s32 %s84, 8
      %p113 = scmp.lt.s32.totalorder %s112, 16
      // Predicated region
      $region50: #{tpu_custom_call.1} parent=46 // pred_check
        %p114 = pneg %p113
      $region51: #{tpu_custom_call.1} parent=46 // pred_check_branch
        %116 = sbr.rel (%p114) target = $region53
      $region52: #{tpu_custom_call.1} parent=46 // pred_region
        %s117 = sadd.s32 %s25, %s112
        %s118 = sld [smem:[#allocation6 + %s117]]
        %p119 = scmp.lt.s32.totalorder %s112, 0
        %s120 = ssub.s32 0, %s112
        %s121 = scalar_select %p119, %s120, %s112
        %s122 = sand.u32 %s121, 7
        %s123 = ssub.s32 0, %s122
        %s124 = scalar_select %p119, %s123, %s122
        %p125 = scmp.ne.s32.totalorder %s124, 0
        %p126 = scmp.lt.s32.totalorder %s124, 0
        %p127 = pnand %p126, %p125
        %p128 = pneg %p127
        %s129 = sadd.s32 %s124, 8
        %s130 = scalar_select %p128, %s129, %s124
        %s131 = scalar_lea.vmem %s2, %s118
        %s132 = scalar_lea.vmem [#allocation2], %s112
        %s133 = scalar_lea.sflag [#allocation4], %s130
        // Predicated region
        $region54: #{tpu_custom_call.1} parent=52 // pred_check
          _
        $region55: #{tpu_custom_call.1} parent=52 // pred_check_branch
          %135 = sbr.rel target = $region57
        $region56: #{tpu_custom_call.1} parent=52 // pred_region
          // Predicated region
          $region69: #{tpu_custom_call.1} parent=56 // pred_check
            _
          $region70: #{tpu_custom_call.1} parent=56 // pred_check_branch
            %151 = sbr.rel (0) target = $region72
          $region71: #{tpu_custom_call.1} parent=56 // pred_region
            %s153 = ssub.s32 2, 1
            loop: start=0, step=1, limit=1
            $region73: #{tpu_custom_call.1} parent=71 // loop_pre_header
              _
            $region74: #{tpu_custom_call.1} parent=71 // loop_header
              %s155 = sphi 0, %s159
              %p156 = scmp.ge.s32.totalorder %s155, 1
              %s160 = sphi %s131, %s131
              %s161 = sphi %s132, %s132
            $region75: #{tpu_custom_call.1} parent=71 // loop_header_branch
              %158 = sbr.rel (%p156) target = $region79
            $region76: #{tpu_custom_call.1} parent=71 // loop_body
              %v162 = vld [vmem:[%s160] sm:%s153]
              %163 = vst [vmem:[%s161] sm:%s153] %v162
            $region77: #{tpu_custom_call.1} parent=71 // loop_footer
              %s159 = sadd.s32 1, %s155
            $region78: #{tpu_custom_call.1} parent=71 // loop_footer_branch
              %154 = sbr.rel target = $region74
            $region79: #{tpu_custom_call.1} parent=71 // loop_exit
              _
          $region72: #{tpu_custom_call.1} parent=56 // pred_fallthru
            _
        $region57: #{tpu_custom_call.1} parent=52 // pred_fallthru
          _
        // Predicated region
        $region58: #{tpu_custom_call.1} parent=52 // pred_check
          _
        $region59: #{tpu_custom_call.1} parent=52 // pred_check_branch
          %137 = sbr.rel (0) target = $region61
        $region60: #{tpu_custom_call.1} parent=52 // pred_region
          %s139 = ssub.s32 2, 1
          loop: start=0, step=1, limit=1
          $region62: #{tpu_custom_call.1} parent=60 // loop_pre_header
            _
          $region63: #{tpu_custom_call.1} parent=60 // loop_header
            %s141 = sphi 0, %s145
            %p142 = scmp.ge.s32.totalorder %s141, 1
            %s146 = sphi %s131, %s131
            %s147 = sphi %s132, %s132
          $region64: #{tpu_custom_call.1} parent=60 // loop_header_branch
            %144 = sbr.rel (%p142) target = $region68
          $region65: #{tpu_custom_call.1} parent=60 // loop_body
            %v148 = vld [vmem:[%s146] sm:%s139]
            %149 = vst [vmem:[%s147] sm:%s139] %v148
          $region66: #{tpu_custom_call.1} parent=60 // loop_footer
            %s145 = sadd.s32 1, %s141
          $region67: #{tpu_custom_call.1} parent=60 // loop_footer_branch
            %140 = sbr.rel target = $region63
          $region68: #{tpu_custom_call.1} parent=60 // loop_exit
            _
        $region61: #{tpu_custom_call.1} parent=52 // pred_fallthru
          _
        // Predicated region
        $region80: #{tpu_custom_call.1} parent=52 // pred_check
          _
        $region81: #{tpu_custom_call.1} parent=52 // pred_check_branch
          %166 = sbr.rel (0) target = $region83
        $region82: #{tpu_custom_call.1} parent=52 // pred_region
          %167 = vsyncadd %s133, 16
        $region83: #{tpu_custom_call.1} parent=52 // pred_fallthru
          _
      $region53: #{tpu_custom_call.1} parent=46 // pred_fallthru
        _
    $region47: #{tpu_custom_call.1} parent=1 // loop_footer
      %s88 = sadd.s32 1, %s84
    $region48: #{tpu_custom_call.1} parent=1 // loop_footer_branch
      %83 = sbr.rel target = $region44
    $region49: #{tpu_custom_call.1} parent=1 // loop_exit
      _
    %v168 = vld [vmem:[#allocation2] sm:$0xff]
    %v169 = vld [vmem:[#allocation2 + $0x8] sm:$0xff]
    %v170 = vld [vmem:[#allocation3] sm:$0xff]
    %v171 = vld [vmem:[#allocation3 + $0x8] sm:$0xff]
    %v172 = vadd.f32 %v168, %v170
    %v173 = vadd.f32 %v169, %v171
    %vm174 = vcmask 261120
    %175 = vst.msk [vmem:[#allocation8] sm:$0xff] %vm174, %v172
    %176 = vst.msk [vmem:[#allocation8 + $0x8] sm:$0xff] %vm174, %v173
    // Predicated region
    $region84: #{tpu_custom_call.1} parent=1 // pred_check
      _
    $region85: #{tpu_custom_call.1} parent=1 // pred_check_branch
      %178 = sbr.rel (0) target = $region87
    $region86: #{tpu_custom_call.1} parent=1 // pred_region
      %180 = vsyncadd [#allocation9], 0
      %s181 = sshll.u32 [#allocation8], 4
      %s182 = int_to_ptr.vmem [resolvable:$true] %s181
      %s183 = sshll.u32 %s4, 4
      %s184 = int_to_ptr.hbm [resolvable:$true] %s183
      %189 = dma.vmem_to_hbm [thread:$0]  %s182, 256, %s184, [#allocation9], 128, 128, 8
    $region87: #{tpu_custom_call.1} parent=1 // pred_fallthru
      _
    // Predicated region
    $region88: #{tpu_custom_call.1} parent=1 // pred_check
      _
    $region89: #{tpu_custom_call.1} parent=1 // pred_check_branch
      %191 = sbr.rel (0) target = $region91
    $region90: #{tpu_custom_call.1} parent=1 // pred_region
      %193 = dma.done [#allocation9], 256
    $region91: #{tpu_custom_call.1} parent=1 // pred_fallthru
      _
    %194 = vsyncpa [#allocation9], 1
  %195 = vsyncmov [#allocation4]
  %s196 = vpop.sfrf %195
  %p197 = scmp.eq.s32.totalorder %s196, 0
  %p198 = pneg %p197
  %200 = shalt.err (%p198)
  %s201 = scalar_lea.sflag [#allocation4], 1
  %202 = vsyncmov %s201
  %s203 = vpop.sfrf %202
  %p204 = scmp.eq.s32.totalorder %s203, 0
  %p205 = pneg %p204
  %207 = shalt.err (%p205)
  %s208 = scalar_lea.sflag [#allocation4], 2
  %209 = vsyncmov %s208
  %s210 = vpop.sfrf %209
  %p211 = scmp.eq.s32.totalorder %s210, 0
  %p212 = pneg %p211
  %214 = shalt.err (%p212)
  %s215 = scalar_lea.sflag [#allocation4], 3
  %216 = vsyncmov %s215
  %s217 = vpop.sfrf %216
  %p218 = scmp.eq.s32.totalorder %s217, 0
  %p219 = pneg %p218
  %221 = shalt.err (%p219)
  %s222 = scalar_lea.sflag [#allocation4], 4
  %223 = vsyncmov %s222
  %s224 = vpop.sfrf %223
  %p225 = scmp.eq.s32.totalorder %s224, 0
  %p226 = pneg %p225
  %228 = shalt.err (%p226)
  %s229 = scalar_lea.sflag [#allocation4], 5
  %230 = vsyncmov %s229
  %s231 = vpop.sfrf %230
  %p232 = scmp.eq.s32.totalorder %s231, 0
  %p233 = pneg %p232
  %235 = shalt.err (%p233)
  %s236 = scalar_lea.sflag [#allocation4], 6
  %237 = vsyncmov %s236
  %s238 = vpop.sfrf %237
  %p239 = scmp.eq.s32.totalorder %s238, 0
  %p240 = pneg %p239
  %242 = shalt.err (%p240)
  %s243 = scalar_lea.sflag [#allocation4], 7
  %244 = vsyncmov %s243
  %s245 = vpop.sfrf %244
  %p246 = scmp.eq.s32.totalorder %s245, 0
  %p247 = pneg %p246
  %249 = shalt.err (%p247)

</llo_original>
